<compile_context>
chip_gen: v5e
topology: v5e:2x2
jax: 0.10.0
libtpu: 0.0.40
codegen_flags: <defaults>
</compile_context>

<pallas_src>
import jax
import jax.numpy as jnp
from jax.experimental import pallas as pl
from jax.experimental.pallas import tpu as pltpu

BN_EPS = 1e-5


def conv_stats_kernel(p_ref, w_ref, y_ref, sum_ref, sq_ref):
    """im2col conv matmul on the MXU (bf16 in, f32 acc) fused with per-(n, channel)
    partial sum / sum-of-squares accumulation (resident across the HW axis)."""

    @pl.when(pl.program_id(1) == 0)
    def _():
        sum_ref[...] = jnp.zeros_like(sum_ref)
        sq_ref[...] = jnp.zeros_like(sq_ref)

    # (Cpad, Kd) @ (Kd, thw) -> (Cpad, thw), lane-dense, f32 accumulate.
    acc = jnp.dot(w_ref[...], p_ref[0], preferred_element_type=jnp.float32)
    y_ref[0] = acc.astype(y_ref.dtype)                   # bf16 intermediate write
    # Lane-axis reductions go to the XLU (separate bundle slot from the MXU push).
    sum_ref[0] += jnp.sum(acc, axis=1, keepdims=True)
    sq_ref[0] += jnp.sum(acc * acc, axis=1, keepdims=True)


def bn_apply_kernel(y_ref, scale_ref, shift_ref, o_ref):
    """Tiled, HBM-bound per-channel affine: o = y * scale + shift."""
    o_ref[0] = y_ref[0].astype(jnp.float32) * scale_ref[...] + shift_ref[...]


def _vmem_config():
    """(tiling budget, scoped vmem limit) derived from this chip's VMEM size."""
    try:
        cap = int(pltpu.get_tpu_info().vmem_capacity_bytes)
    except Exception:                       # conservative fallback (v7x-sized)
        cap = 64 * 1024 * 1024
    budget = int(cap * 0.45)                # honest per-step working-set budget
    limit = min(int(cap * 0.8), 100 * 1024 * 1024)
    return budget, limit


def _pick_hw_tile(hw, kd, cpad, budget_bytes, max_tile=32768):
    """Largest multiple-of-128 HW tile whose per-step working set fits budget."""
    hw128 = -(-hw // 128) * 128

    def need(t):
        # Kernel 1: double-buffered bf16 patch / weight / conv-out blocks plus
        # the f32 acc and acc*acc temporaries (stats blocks are negligible).
        k1 = (2 * kd * t * 2
              + 2 * cpad * kd * 2
              + 2 * cpad * t * 2
              + 2 * cpad * t * 4)
        # Kernel 2: double-buffered bf16 input + f32 output blocks + upcast temp.
        k2 = (2 * cpad * t * 2
              + 2 * cpad * t * 4
              + cpad * t * 4)
        return max(k1, k2)

    t = max((min(hw128, max_tile) // 128) * 128, 128)
    while t > 128 and need(t) > budget_bytes:
        t -= 128
    return t


def convbn_forward(x, w, b, gamma, beta, stride, padding):
    # Conv bias cancels exactly under training-mode BN mean subtraction: skip it.
    del b
    N, Cin, H, W = x.shape
    Cout, _, Kh, Kw = w.shape
    Hout = (H + 2 * padding - Kh) // stride + 1
    Wout = (W + 2 * padding - Kw) // stride + 1
    HW = Hout * Wout
    Kd = Cin * Kh * Kw
    # Channels are on the SUBLANE axis -> pad only to the bf16 sublane tile (16).
    Cpad = ((Cout + 15) // 16) * 16

    budget, vmem_limit = _vmem_config()
    thw = _pick_hw_tile(HW, Kd, Cpad, budget)
    HWpad = -(-HW // thw) * thw           # zero-padded columns are numerically inert
    grid = (N, HWpad // thw)

    # ---- glue: fused patch extraction (single XLA op), bf16 for the MXU ----
    # Output feature dim is Cin-major then (kh, kw), matching w.reshape(Cout, Kd).
    patches = jax.lax.conv_general_dilated_patches(
        x.astype(jnp.bfloat16), (Kh, Kw), (stride, stride),
        [(padding, padding), (padding, padding)])
    patches = patches.reshape(N, Kd, HW)
    if HWpad != HW:
        patches = jnp.pad(patches, ((0, 0), (0, 0), (0, HWpad - HW)))

    w2t = w.reshape(Cout, Kd).astype(jnp.bfloat16)
    w2t = jnp.pad(w2t, ((0, Cpad - Cout), (0, 0)))           # (Cpad, Kd)

    # ---- Pallas kernel 1: conv matmul + fused per-(n, channel) partial stats ----
    # TODO(synk): for very large Kd add a K grid axis with a VMEM f32 accumulator
    # instead of a single full-Kd block.
    conv_out, psum, psq = pl.pallas_call(
        conv_stats_kernel,
        out_shape=(jax.ShapeDtypeStruct((N, Cpad, HWpad), jnp.bfloat16),
                   jax.ShapeDtypeStruct((N, Cpad, 1), jnp.float32),
                   jax.ShapeDtypeStruct((N, Cpad, 1), jnp.float32)),
        grid_spec=pltpu.PrefetchScalarGridSpec(
            num_scalar_prefetch=0,
            grid=grid,
            in_specs=[pl.BlockSpec((1, Kd, thw), lambda n, j: (n, 0, j)),
                      pl.BlockSpec((Cpad, Kd), lambda n, j: (0, 0))],
            out_specs=[pl.BlockSpec((1, Cpad, thw), lambda n, j: (n, 0, j)),
                       pl.BlockSpec((1, Cpad, 1), lambda n, j: (n, 0, 0)),
                       pl.BlockSpec((1, Cpad, 1), lambda n, j: (n, 0, 0))]),
        compiler_params=pltpu.CompilerParams(
            dimension_semantics=("parallel", "arbitrary"),
            vmem_limit_bytes=vmem_limit),
    )(patches, w2t)

    # ---- tiny per-channel BN math in plain JAX (Cpad scalars per channel) ----
    count = float(N * HW)                 # true element count (padding adds zeros)
    ch_sum = jnp.sum(psum, axis=0)        # (Cpad, 1)
    ch_sq = jnp.sum(psq, axis=0)
    mean = ch_sum / count
    var = jnp.maximum(ch_sq / count - mean * mean, 0.0)   # clamp f32 cancellation
    inv = jax.lax.rsqrt(var + BN_EPS)
    gamma_p = jnp.pad(gamma.astype(jnp.float32), (0, Cpad - Cout)).reshape(Cpad, 1)
    beta_p = jnp.pad(beta.astype(jnp.float32), (0, Cpad - Cout)).reshape(Cpad, 1)
    scale = gamma_p * inv
    shift = beta_p - mean * scale

    # ---- Pallas kernel 2: tiled BatchNorm affine (mem-bound) ----
    y = pl.pallas_call(
        bn_apply_kernel,
        out_shape=jax.ShapeDtypeStruct((N, Cpad, HWpad), jnp.float32),
        grid_spec=pltpu.PrefetchScalarGridSpec(
            num_scalar_prefetch=0,
            grid=grid,
            in_specs=[pl.BlockSpec((1, Cpad, thw), lambda n, j: (n, 0, j)),
                      pl.BlockSpec((Cpad, 1), lambda n, j: (0, 0)),
                      pl.BlockSpec((Cpad, 1), lambda n, j: (0, 0))],
            out_specs=pl.BlockSpec((1, Cpad, thw), lambda n, j: (n, 0, j))),
        compiler_params=pltpu.CompilerParams(
            dimension_semantics=("parallel", "parallel"),
            vmem_limit_bytes=vmem_limit),
    )(conv_out, scale, shift)

    # Channels already second dim -> NCHW via cheap slice + free reshape.
    # TODO(synk): BatchNorm running_mean/running_var buffers are not updated
    # (forward activations only, training-mode batch statistics).
    return y[:, :Cout, :HW].reshape(N, Cout, Hout, Wout)


if __name__ == "__main__":
    key = jax.random.PRNGKey(0)
    k1, k2, k3, k4, k5 = jax.random.split(key, 5)

    # Small shapes consistent with the module: in=4, out=8, k=3, stride=1, pad=1.
    N, Cin, H, W = 2, 4, 16, 16
    Cout, K, stride, padding = 8, 3, 1, 1

    x = jax.random.normal(k1, (N, Cin, H, W), jnp.float32)
    w = jax.random.normal(k2, (Cout, Cin, K, K), jnp.float32) * 0.1
    b = jax.random.normal(k3, (Cout,), jnp.float32) * 0.1
    gamma = 1.0 + 0.1 * jax.random.normal(k4, (Cout,), jnp.float32)
    beta = 0.1 * jax.random.normal(k5, (Cout,), jnp.float32)

    out = convbn_forward(x, w, b, gamma, beta, stride, padding)
    out = jax.block_until_ready(out)

    # Pure-JAX f32 reference (conv + bias + training-mode BN).
    conv_ref = jax.lax.conv_general_dilated(
        x, w, (stride, stride), [(padding, padding), (padding, padding)],
        dimension_numbers=("NCHW", "OIHW", "NCHW")) + b.reshape(1, Cout, 1, 1)
    mean = conv_ref.mean(axis=(0, 2, 3), keepdims=True)
    var = ((conv_ref - mean) ** 2).mean(axis=(0, 2, 3), keepdims=True)
    ref = ((conv_ref - mean) * jax.lax.rsqrt(var + BN_EPS)
           * gamma.reshape(1, Cout, 1, 1) + beta.reshape(1, Cout, 1, 1))

    assert out.shape == (N, Cout, H, W)
    # bf16 MXU inputs + bf16 intermediate vs f32 reference -> relaxed tolerance.
    assert jnp.allclose(out, ref, atol=5e-2, rtol=5e-2), "mismatch vs reference"
    print("KERNEL_OK")
</pallas_src>

<mosaic_0001>
module attributes {stable_mosaic.version = 11 : i64} {
  func.func @conv_stats_kernel(%arg0: i32, %arg1: i32, %arg2: memref<1x36x256xbf16, #tpu.memory_space<vmem>>, %arg3: memref<16x36xbf16, #tpu.memory_space<vmem>>, %arg4: memref<1x16x256xbf16, #tpu.memory_space<vmem>>, %arg5: memref<1x16x1xf32, #tpu.memory_space<vmem>>, %arg6: memref<1x16x1xf32, #tpu.memory_space<vmem>>) attributes {dimension_semantics = [#tpu.dimension_semantics<parallel>, #tpu.dimension_semantics<arbitrary>], iteration_bounds = array<i64: 2, 1>, scalar_prefetch = 0 : i64, scratch_operands = 0 : i64, tpu.core_type = #tpu.core_type<tc>, window_params = [{transform_indices = @transform_0, window_bounds = array<i64: 1, 36, 256>}, {pipeline_mode = #tpu.pipeline_mode<synchronous>, transform_indices = @transform_1, window_bounds = array<i64: 16, 36>}, {transform_indices = @transform_2, window_bounds = array<i64: 1, 16, 256>}, {transform_indices = @transform_3, window_bounds = array<i64: 1, 16, 1>}, {transform_indices = @transform_4, window_bounds = array<i64: 1, 16, 1>}]} {
    %c0_i32 = arith.constant 0 : i32
    %0 = arith.cmpi eq, %arg1, %c0_i32 : i32
    %1 = arith.extui %0 : i1 to i32
    %c0_i32_0 = arith.constant 0 : i32
    %2 = arith.cmpi ne, %1, %c0_i32_0 : i32
    scf.if %2 {
      %cst_22 = arith.constant 0.000000e+00 : f32
      %28 = vector.broadcast %cst_22 : f32 to vector<1x16x1xf32>
      %c0_23 = arith.constant 0 : index
      %c0_24 = arith.constant 0 : index
      %c0_25 = arith.constant 0 : index
      %29 = vector.load %arg5[%c0_23, %c0_24, %c0_25] : memref<1x16x1xf32, #tpu.memory_space<vmem>>, vector<1x16x1xf32>
      tpu.vector_store %arg5[%c0_23, %c0_24, %c0_25], %28 {strides = array<i32>} : memref<1x16x1xf32, #tpu.memory_space<vmem>>, vector<1x16x1xf32>,
      %cst_26 = arith.constant 0.000000e+00 : f32
      %30 = vector.broadcast %cst_26 : f32 to vector<1x16x1xf32>
      %c0_27 = arith.constant 0 : index
      %c0_28 = arith.constant 0 : index
      %c0_29 = arith.constant 0 : index
      %31 = vector.load %arg6[%c0_27, %c0_28, %c0_29] : memref<1x16x1xf32, #tpu.memory_space<vmem>>, vector<1x16x1xf32>
      tpu.vector_store %arg6[%c0_27, %c0_28, %c0_29], %30 {strides = array<i32>} : memref<1x16x1xf32, #tpu.memory_space<vmem>>, vector<1x16x1xf32>,
    } else {
    }
    %c0 = arith.constant 0 : index
    %c0_1 = arith.constant 0 : index
    %3 = vector.load %arg3[%c0, %c0_1] : memref<16x36xbf16, #tpu.memory_space<vmem>>, vector<16x36xbf16>
    %c0_2 = arith.constant 0 : index
    %c0_3 = arith.constant 0 : index
    %c0_4 = arith.constant 0 : index
    %4 = vector.load %arg2[%c0_2, %c0_3, %c0_4] : memref<1x36x256xbf16, #tpu.memory_space<vmem>>, vector<1x36x256xbf16>
    %5 = vector.shape_cast %4 : vector<1x36x256xbf16> to vector<36x256xbf16>
    %cst = arith.constant dense<0.000000e+00> : vector<16x256xf32>
    %6 = tpu.matmul %3, %5, %cst {dimension_numbers = #tpu.dot_dimension_numbers<[1], [0], [0], [1], [0, 0, 1, 1], [], []>} : vector<16x36xbf16>, vector<36x256xbf16>, vector<16x256xf32> -> vector<16x256xf32>
    %7 = arith.truncf %6 : vector<16x256xf32> to vector<16x256xbf16>
    %c0_5 = arith.constant 0 : index
    %c0_6 = arith.constant 0 : index
    %c0_7 = arith.constant 0 : index
    %8 = vector.load %arg4[%c0_5, %c0_6, %c0_7] : memref<1x16x256xbf16, #tpu.memory_space<vmem>>, vector<1x16x256xbf16>
    %9 = vector.shape_cast %8 : vector<1x16x256xbf16> to vector<16x256xbf16>
    %10 = vector.shape_cast %7 : vector<16x256xbf16> to vector<1x16x256xbf16>
    tpu.vector_store %arg4[%c0_5, %c0_6, %c0_7], %10 {strides = array<i32>} : memref<1x16x256xbf16, #tpu.memory_space<vmem>>, vector<1x16x256xbf16>,
    %c0_8 = arith.constant 0 : index
    %c0_9 = arith.constant 0 : index
    %c0_10 = arith.constant 0 : index
    %11 = vector.load %arg5[%c0_8, %c0_9, %c0_10] : memref<1x16x1xf32, #tpu.memory_space<vmem>>, vector<1x16x1xf32>
    %12 = vector.shape_cast %11 : vector<1x16x1xf32> to vector<16x1xf32>
    %cst_11 = arith.constant dense<0.000000e+00> : vector<16xf32>
    %13 = vector.multi_reduction <add>, %6, %cst_11 [1] : vector<16x256xf32> to vector<16xf32>
    %14 = vector.shape_cast %13 : vector<16xf32> to vector<16x1xf32>
    %15 = arith.addf %12, %14 : vector<16x1xf32>
    %c0_12 = arith.constant 0 : index
    %c0_13 = arith.constant 0 : index
    %c0_14 = arith.constant 0 : index
    %16 = vector.load %arg5[%c0_12, %c0_13, %c0_14] : memref<1x16x1xf32, #tpu.memory_space<vmem>>, vector<1x16x1xf32>
    %17 = vector.shape_cast %16 : vector<1x16x1xf32> to vector<16x1xf32>
    %18 = vector.shape_cast %15 : vector<16x1xf32> to vector<1x16x1xf32>
    tpu.vector_store %arg5[%c0_12, %c0_13, %c0_14], %18 {strides = array<i32>} : memref<1x16x1xf32, #tpu.memory_space<vmem>>, vector<1x16x1xf32>,
    %c0_15 = arith.constant 0 : index
    %c0_16 = arith.constant 0 : index
    %c0_17 = arith.constant 0 : index
    %19 = vector.load %arg6[%c0_15, %c0_16, %c0_17] : memref<1x16x1xf32, #tpu.memory_space<vmem>>, vector<1x16x1xf32>
    %20 = vector.shape_cast %19 : vector<1x16x1xf32> to vector<16x1xf32>
    %21 = arith.mulf %6, %6 : vector<16x256xf32>
    %cst_18 = arith.constant dense<0.000000e+00> : vector<16xf32>
    %22 = vector.multi_reduction <add>, %21, %cst_18 [1] : vector<16x256xf32> to vector<16xf32>
    %23 = vector.shape_cast %22 : vector<16xf32> to vector<16x1xf32>
    %24 = arith.addf %20, %23 : vector<16x1xf32>
    %c0_19 = arith.constant 0 : index
    %c0_20 = arith.constant 0 : index
    %c0_21 = arith.constant 0 : index
    %25 = vector.load %arg6[%c0_19, %c0_20, %c0_21] : memref<1x16x1xf32, #tpu.memory_space<vmem>>, vector<1x16x1xf32>
    %26 = vector.shape_cast %25 : vector<1x16x1xf32> to vector<16x1xf32>
    %27 = vector.shape_cast %24 : vector<16x1xf32> to vector<1x16x1xf32>
    tpu.vector_store %arg6[%c0_19, %c0_20, %c0_21], %27 {strides = array<i32>} : memref<1x16x1xf32, #tpu.memory_space<vmem>>, vector<1x16x1xf32>,
    return
  }
  func.func @transform_0(%arg0: i32, %arg1: i32) -> (i32, i32, i32) {
    %c0_i32 = arith.constant 0 : i32
    %c0_i32_0 = arith.constant 0 : i32
    return %arg0, %c0_i32, %arg1 : i32, i32, i32
  }
  func.func @transform_1(%arg0: i32, %arg1: i32) -> (i32, i32) {
    %c0_i32 = arith.constant 0 : i32
    %c0_i32_0 = arith.constant 0 : i32
    %c0_i32_1 = arith.constant 0 : i32
    return %c0_i32, %c0_i32_0 : i32, i32
  }
  func.func @transform_2(%arg0: i32, %arg1: i32) -> (i32, i32, i32) {
    %c0_i32 = arith.constant 0 : i32
    %c0_i32_0 = arith.constant 0 : i32
    return %arg0, %c0_i32, %arg1 : i32, i32, i32
  }
  func.func @transform_3(%arg0: i32, %arg1: i32) -> (i32, i32, i32) {
    %c0_i32 = arith.constant 0 : i32
    %c0_i32_0 = arith.constant 0 : i32
    %c0_i32_1 = arith.constant 0 : i32
    return %arg0, %c0_i32, %c0_i32_0 : i32, i32, i32
  }
  func.func @transform_4(%arg0: i32, %arg1: i32) -> (i32, i32, i32) {
    %c0_i32 = arith.constant 0 : i32
    %c0_i32_0 = arith.constant 0 : i32
    %c0_i32_1 = arith.constant 0 : i32
    return %arg0, %c0_i32, %c0_i32_0 : i32, i32, i32
  }
}

</mosaic_0001>

<llo_original>
// kernel: tpu_custom_call.1
$region0: #{tpu_custom_call.1}
  #allocation0 [shape = 'u32[]', space=smem, size = 0x4, offset = 0x4, fixed_abs, tag = 'smem constant byte address 0x4 - core index']
  #allocation1 [shape = 'u32[72,128]{1,0:T(1,128)}', space=vmem, size = 0x9000, scoped, tag = 'internal scratch']
  %s0 = inlined_call_operand.vmem [shape: bf16[2,36,256], index: 0, kind: input, shape index: {}]
  %s1 = inlined_call_operand.vmem [shape: bf16[16,36], index: 1, kind: input, shape index: {}]
  %s2 = inlined_call_operand.hbm [shape: bf16[2,16,256], index: 2, kind: output, shape index: {0}]
  %s3 = inlined_call_operand.vmem [shape: f32[2,16,1], index: 3, kind: output, shape index: {1}]
  %s4 = inlined_call_operand.vmem [shape: f32[2,16,1], index: 4, kind: output, shape index: {2}]
  %5 = xla_tuple %s2, %s3, %s4
  %s6 = sld [smem:[#allocation0]]
  $region61: #{tpu_custom_call.1} parent=0
    _
  %s8 = ssub.s32 1, %s6
  %s9 = scalar_select 0, %s8, %s6
  $region1: #{tpu_custom_call.1} parent=0
    #allocation2 [shape = 'u8[16384]{0}', space=vmem, size = 0x4000, scoped, tag = 'output window, operand 0']
    #allocation3 [shape = 's32[2]{0}', space=sflag, size = 0x8, scoped, tag = 'scoped memory for tpu_custom_call.1']
    %10 = vsyncpa [#allocation3], 0
    %s11 = scalar_lea.sflag [#allocation3], 1
    %12 = vsyncpa %s11, 0
    loop: start=0, step=1, limit=4
    $region2: #{tpu_custom_call.1} parent=1 // loop_pre_header
      _
    $region3: #{tpu_custom_call.1} parent=1 // loop_header
      %s14 = sphi 0, %s18
      %p15 = scmp.ge.s32.totalorder %s14, 4
      %s21 = sphi 0, %s33
      %s22 = sphi 0, %s29
      %s23 = sphi 0, %s21
      %s24 = sphi 0, %s22
      %s25 = sphi 0, %s23
      %s26 = sphi 0, %s24
      %s38 = sphi 0, %s40
      %s41 = sphi 0, %s38
      %s42 = sphi 0, %s41
      %s58 = sphi 0, %s42
      %s62 = sphi 0, %s62
      %s64 = sphi 0, %s62
      %s65 = sphi 0, %s64
      %s79 = sphi 0, %s65
      %s87 = sphi 0, %s89
      %s90 = sphi 0, %s87
      %s91 = sphi 0, %s90
      %s107 = sphi 0, %s91
      %s113 = sphi 0, %s115
      %s116 = sphi 0, %s113
      %s117 = sphi 0, %s116
      %s133 = sphi 0, %s117
      %s139 = sphi 0, %s141
      %s142 = sphi 0, %s139
      %s143 = sphi 0, %s142
      %s159 = sphi 0, %s143
    $region4: #{tpu_custom_call.1} parent=1 // loop_header_branch
      %17 = sbr.rel (%p15) target = $region8
    $region5: #{tpu_custom_call.1} parent=1 // loop_body
      %s19 = ssub.s32 %s14, 1
      %s20 = ssub.s32 %s14, 2
      %s27 = sadd.s32 1, %s22
      %p28 = scmp.ge.s32.totalorder %s27, 1
      %s29 = scalar_select %p28, 0, %s27
      %s30 = sadd.s32 1, %s21
      %s31 = scalar_select %p28, %s30, %s21
      %p32 = scmp.ge.s32.totalorder %s31, 2
      %s33 = scalar_select %p32, 0, %s31
      %s34 = ssub.s32 %s21, %s33
      %s35 = ssub.s32 %s22, %s29
      %s36 = sor.u32 %s34, %s35
      %p37 = scmp.eq.s32.totalorder %s36, 0
      %s39 = sadd.s32 %s38, 1
      %s40 = scalar_select %p37, %s38, %s39
      %p43 = pneg %p37
      %p44 = scmp.eq.s32.totalorder %s14, 1
      %p45 = por %p43, %p44
      %p46 = scmp.ne.s32.totalorder %s38, %s41
      %p47 = scmp.eq.s32.totalorder %s14, 0
      %p48 = por %p46, %p47
      %p49 = scmp.ne.s32.totalorder %s38, %s41
      %p50 = scmp.eq.s32.totalorder %s19, 1
      %p51 = por %p49, %p50
      %p52 = scmp.ne.s32.totalorder %s41, %s42
      %p53 = scmp.eq.s32.totalorder %s19, 0
      %p54 = por %p52, %p53
      %p55 = scmp.ne.s32.totalorder %s41, %s42
      %p56 = scmp.eq.s32.totalorder %s20, 1
      %p57 = por %p55, %p56
      %p59 = scmp.ne.s32.totalorder %s42, %s58
      %p60 = scmp.eq.s32.totalorder %s20, 0
      %p61 = por %p59, %p60
      %s63 = sadd.s32 %s62, 1
      %p66 = scmp.eq.s32.totalorder %s14, 1
      %p67 = scmp.ne.s32.totalorder %s62, %s64
      %p68 = scmp.eq.s32.totalorder %s14, 0
      %p69 = por %p67, %p68
      %p70 = scmp.ne.s32.totalorder %s62, %s64
      %p71 = scmp.eq.s32.totalorder %s19, 1
      %p72 = por %p70, %p71
      %p73 = scmp.ne.s32.totalorder %s64, %s65
      %p74 = scmp.eq.s32.totalorder %s19, 0
      %p75 = por %p73, %p74
      %p76 = scmp.ne.s32.totalorder %s64, %s65
      %p77 = scmp.eq.s32.totalorder %s20, 1
      %p78 = por %p76, %p77
      %p80 = scmp.ne.s32.totalorder %s65, %s79
      %p81 = scmp.eq.s32.totalorder %s20, 0
      %p82 = por %p80, %p81
      %s83 = ssub.s32 %s21, %s33
      %s84 = ssub.s32 %s22, %s29
      %s85 = sor.u32 %s83, %s84
      %p86 = scmp.eq.s32.totalorder %s85, 0
      %s88 = sadd.s32 %s87, 1
      %s89 = scalar_select %p86, %s87, %s88
      %p92 = pneg %p86
      %p93 = scmp.eq.s32.totalorder %s14, 1
      %p94 = por %p92, %p93
      %p95 = scmp.ne.s32.totalorder %s87, %s90
      %p96 = scmp.eq.s32.totalorder %s14, 0
      %p97 = por %p95, %p96
      %p98 = scmp.ne.s32.totalorder %s87, %s90
      %p99 = scmp.eq.s32.totalorder %s19, 1
      %p100 = por %p98, %p99
      %p101 = scmp.ne.s32.totalorder %s90, %s91
      %p102 = scmp.eq.s32.totalorder %s19, 0
      %p103 = por %p101, %p102
      %p104 = scmp.ne.s32.totalorder %s90, %s91
      %p105 = scmp.eq.s32.totalorder %s20, 1
      %p106 = por %p104, %p105
      %p108 = scmp.ne.s32.totalorder %s91, %s107
      %p109 = scmp.eq.s32.totalorder %s20, 0
      %p110 = por %p108, %p109
      %s111 = ssub.s32 %s21, %s33
      %p112 = scmp.eq.s32.totalorder %s111, 0
      %s114 = sadd.s32 %s113, 1
      %s115 = scalar_select %p112, %s113, %s114
      %p118 = pneg %p112
      %p119 = scmp.eq.s32.totalorder %s14, 1
      %p120 = por %p118, %p119
      %p121 = scmp.ne.s32.totalorder %s113, %s116
      %p122 = scmp.eq.s32.totalorder %s14, 0
      %p123 = por %p121, %p122
      %p124 = scmp.ne.s32.totalorder %s113, %s116
      %p125 = scmp.eq.s32.totalorder %s19, 1
      %p126 = por %p124, %p125
      %p127 = scmp.ne.s32.totalorder %s116, %s117
      %p128 = scmp.eq.s32.totalorder %s19, 0
      %p129 = por %p127, %p128
      %p130 = scmp.ne.s32.totalorder %s116, %s117
      %p131 = scmp.eq.s32.totalorder %s20, 1
      %p132 = por %p130, %p131
      %p134 = scmp.ne.s32.totalorder %s117, %s133
      %p135 = scmp.eq.s32.totalorder %s20, 0
      %p136 = por %p134, %p135
      %s137 = ssub.s32 %s21, %s33
      %p138 = scmp.eq.s32.totalorder %s137, 0
      %s140 = sadd.s32 %s139, 1
      %s141 = scalar_select %p138, %s139, %s140
      %p144 = pneg %p138
      %p145 = scmp.eq.s32.totalorder %s14, 1
      %p146 = por %p144, %p145
      %p147 = scmp.ne.s32.totalorder %s139, %s142
      %p148 = scmp.eq.s32.totalorder %s14, 0
      %p149 = por %p147, %p148
      %p150 = scmp.ne.s32.totalorder %s139, %s142
      %p151 = scmp.eq.s32.totalorder %s19, 1
      %p152 = por %p150, %p151
      %p153 = scmp.ne.s32.totalorder %s142, %s143
      %p154 = scmp.eq.s32.totalorder %s19, 0
      %p155 = por %p153, %p154
      %p156 = scmp.ne.s32.totalorder %s142, %s143
      %p157 = scmp.eq.s32.totalorder %s20, 1
      %p158 = por %p156, %p157
      %p160 = scmp.ne.s32.totalorder %s143, %s159
      %p161 = scmp.eq.s32.totalorder %s20, 0
      %p162 = por %p160, %p161
      %p163 = scmp.le.s32.totalorder 1, %s14
      %p164 = scmp.lt.s32.totalorder %s14, 3
      %p165 = pnand %p163, %p164
      %p166 = pneg %p165
      // Predicated region
      $region9: #{tpu_custom_call.1} parent=5 // pred_check
        _
      $region10: #{tpu_custom_call.1} parent=5 // pred_check_branch
        %168 = sbr.rel (%p165) target = $region12
      $region11: #{tpu_custom_call.1} parent=5 // pred_region
        %s169 = ssub.s32 %s14, 1
        // Predicated region
        $region13: #{tpu_custom_call.1} parent=11 // pred_check
          %p170 = pneg %p75
        $region14: #{tpu_custom_call.1} parent=11 // pred_check_branch
          %172 = sbr.rel (%p170) target = $region16
        $region15: #{tpu_custom_call.1} parent=11 // pred_region
          _
        $region16: #{tpu_custom_call.1} parent=11 // pred_fallthru
          _
      $region12: #{tpu_custom_call.1} parent=5 // pred_fallthru
        _
      %p173 = scmp.lt.s32.totalorder %s14, 2
      // Predicated region
      $region17: #{tpu_custom_call.1} parent=5 // pred_check
        %p174 = pneg %p173
      $region18: #{tpu_custom_call.1} parent=5 // pred_check_branch
        %176 = sbr.rel (%p174) target = $region20
      $region19: #{tpu_custom_call.1} parent=5 // pred_region
        // Predicated region
        $region21: #{tpu_custom_call.1} parent=19 // pred_check
          %p177 = pneg %p48
        $region22: #{tpu_custom_call.1} parent=19 // pred_check_branch
          %179 = sbr.rel (%p177) target = $region24
        $region23: #{tpu_custom_call.1} parent=19 // pred_region
          %s180 = smul.u32 2, %s22
          %p181 = scmp.lt.s32.totalorder %s21, 1
          %s182 = scalar_select %p181, %s21, 1
          %p183 = scmp.lt.s32.totalorder %s180, 1
          %s184 = scalar_select %p183, %s180, 1
          %s185 = smul.addr %s182, 10
          %s186 = sadd.s32 %s184, %s185
          %s187 = smul.addr %s186, 4
          %s188 = scalar_lea.vmem %s0, %s187
          %s189 = smul.u32 2, %s22
        $region24: #{tpu_custom_call.1} parent=19 // pred_fallthru
          _
      $region20: #{tpu_custom_call.1} parent=5 // pred_fallthru
        _
      %p190 = scmp.le.s32.totalorder 1, %s14
      %p191 = scmp.lt.s32.totalorder %s14, 3
      %p192 = pnand %p190, %p191
      %p193 = pneg %p192
      // Predicated region
      $region25: #{tpu_custom_call.1} parent=5 // pred_check
        _
      $region26: #{tpu_custom_call.1} parent=5 // pred_check_branch
        %195 = sbr.rel (%p192) target = $region28
      $region27: #{tpu_custom_call.1} parent=5 // pred_region
        %s196 = ssub.s32 %s14, 1
        %s197 = smul.u32 2, %s24
        %p198 = scmp.lt.s32.totalorder %s23, 1
        %s199 = scalar_select %p198, %s23, 1
        %p200 = scmp.lt.s32.totalorder %s197, 1
        %s201 = scalar_select %p200, %s197, 1
        %s202 = smul.addr %s199, 10
        %s203 = sadd.s32 %s201, %s202
        %s204 = smul.addr %s203, 4
        %s205 = scalar_lea.vmem %s0, %s204
        %p206 = pneg %p54
        %p207 = pneg %p51
        %p208 = pneg %p75
        %p209 = pneg %p72
        %p210 = pneg %p103
        %p211 = pneg %p100
        %s212 = sand.u32 %s90, 1
        %s213 = scalar_lea.sflag [#allocation3], %s212
        %s214 = sand.u32 %s90, 1
        %s215 = smul.addr %s214, 16
        %s216 = scalar_lea.vmem [#allocation2], %s215
        %p217 = pneg %p129
        %p218 = pneg %p126
        %p219 = scmp.lt.s32.totalorder %s23, 1
        %s220 = scalar_select %p219, %s23, 1
        %s221 = smul.addr %s220, 2
        %s222 = smul.addr %s221, 8
        %s223 = scalar_lea.vmem %s3, %s222
        %p224 = pneg %p155
        %p225 = pneg %p152
        %p226 = scmp.lt.s32.totalorder %s23, 1
        %s227 = scalar_select %p226, %s23, 1
        %s228 = smul.addr %s227, 2
        %s229 = smul.addr %s228, 8
        %s230 = scalar_lea.vmem %s4, %s229
        %s231 = smul.u32 2, %s24
        %p232 = scmp.lt.s32.totalorder %s23, 1
        %s233 = scalar_select %p232, %s23, 1
        %p234 = scmp.lt.s32.totalorder %s231, 1
        %s235 = scalar_select %p234, %s231, 1
        %s236 = smul.addr %s233, 10
        %s237 = sadd.s32 %s235, %s236
        %s238 = smul.addr %s237, 4
        %s239 = scalar_lea.vmem %s0, %s238
        %s240 = smul.u32 2, %s24
        %s241 = smul.u32 2, %s24
        %p242 = scmp.lt.s32.totalorder %s23, 1
        %s243 = scalar_select %p242, %s23, 1
        %s244 = smul.addr %s243, 2
        %s245 = smul.addr %s244, 8
        %s246 = scalar_lea.vmem %s3, %s245
        %p247 = scmp.lt.s32.totalorder %s23, 1
        %s248 = scalar_select %p247, %s23, 1
        %s249 = smul.addr %s248, 2
        %s250 = smul.addr %s249, 8
        %s251 = scalar_lea.vmem %s4, %s250
        %p253 = scmp.eq.s32.totalorder %s24, 0
        // Predicated region
        $region29: #{tpu_custom_call.1} parent=27 // pred_check
          %p254 = pneg %p253
        $region30: #{tpu_custom_call.1} parent=27 // pred_check_branch
          %256 = sbr.rel (%p254) target = $region32
        $region31: #{tpu_custom_call.1} parent=27 // pred_region
          %vm257 = vcmask 7168
          %258 = vst.msk [vmem:[%s246] sm:$0xff] %vm257, 0.0
          %259 = vst.msk [vmem:[%s246 + $0x8] sm:$0xff] %vm257, 0.0
          %260 = vst.msk [vmem:[%s251] sm:$0xff] %vm257, 0.0
          %261 = vst.msk [vmem:[%s251 + $0x8] sm:$0xff] %vm257, 0.0
        $region32: #{tpu_custom_call.1} parent=27 // pred_fallthru
          _
        %v262 = vld [vmem:[%s1] sm:$0xf]
        %v263 = vld [vmem:[%s1 + $0x4] sm:$0xf]
        %v264 = vld [vmem:[%s239] sm:$0xff]
        %v265 = vld [vmem:[%s239 + $0x8] sm:$0xff]
        %v266 = vld [vmem:[%s239 + $0x10] sm:$0xff]
        %v267 = vld [vmem:[%s239 + $0x18] sm:$0xff]
        %v268 = vld [vmem:[%s239 + $0x20] sm:$0x33]
        %v271 = vunpack.c.l.b16 %v262
        %v272 = vunpack.c.l.b16 %v263
        %v273 = vpack.c.b16 %v272, %v271
        %v279 = vunpack.c.l.b16 %v264
        %v280 = vunpack.c.h.b16 %v264
        %v281 = vunpack.c.l.b16 %v265
        %v282 = vunpack.c.h.b16 %v265
        %v283 = vunpack.c.l.b16 %v266
        %v284 = vunpack.c.h.b16 %v266
        %v285 = vunpack.c.l.b16 %v267
        %v286 = vunpack.c.h.b16 %v267
        %v287 = vunpack.c.l.b16 %v268
        %v288 = vunpack.c.h.b16 %v268
        %v289 = vpack.c.b16 %v281, %v279
        %v290 = vpack.c.b16 %v282, %v280
        %v291 = vpack.c.b16 %v285, %v283
        %v292 = vpack.c.b16 %v286, %v284
        %v293 = vpack.c.b16 %v287, %v287
        %v294 = vpack.c.b16 %v288, %v288
        %vm299 = vcmask 293888
        %v301 = vsel %vm299, %v273, 0
        %vm303 = vcmask 1041408
        %v305 = vsel %vm303, %v293, 0
        %v308 = vsel %vm303, %v294, 0
        %310 = vmatpush.bf16.msra.mxu0 0
        %311 = vmatpush.bf16.msra.mxu0 0
        %312 = vmatpush.bf16.msra.mxu0 0
        %313 = vmatpush.bf16.msra.mxu0 0
        %314 = vmatpush.bf16.msra.mxu0 0
        %315 = vmatpush.bf16.msra.mxu0 %v305
        %316 = vmatpush.bf16.msra.mxu0 %v291
        %317 = vmatpush.bf16.msra.mxu0 %v289
        %318 = vmatmul.bf16.gmra.mxu0 %v301
        %v319 = vpop.f32.mrf.mxu0
        %v320 = vadd.f32 0.0, %v319
        %v321 = vpop.f32.mrf.mxu0
        %v322 = vadd.f32 0.0, %v321
        %323 = vdwg.mxu0
        %324 = vmatpush.bf16.msra.mxu0 0
        %325 = vmatpush.bf16.msra.mxu0 0
        %326 = vmatpush.bf16.msra.mxu0 0
        %327 = vmatpush.bf16.msra.mxu0 0
        %328 = vmatpush.bf16.msra.mxu0 0
        %329 = vmatpush.bf16.msra.mxu0 %v308
        %330 = vmatpush.bf16.msra.mxu0 %v292
        %331 = vmatpush.bf16.msra.mxu0 %v290
        %332 = vmatmul.bf16.gmra.mxu0 %v301
        %v333 = vpop.f32.mrf.mxu0
        %v334 = vadd.f32 0.0, %v333
        %v335 = vpop.f32.mrf.mxu0
        %v336 = vadd.f32 0.0, %v335
        %337 = vdwg.mxu0
        %v338 = vpack.c.bf16 %v334, %v320
        %v339 = vpack.c.bf16 %v336, %v322
        %340 = vst [vmem:[%s216] sm:$0xff] %v338
        %341 = vst [vmem:[%s216 + $0x8] sm:$0xff] %v339
        %v342 = vld [vmem:[%s246] sm:$0xff]
        %v343 = vld [vmem:[%s246 + $0x8] sm:$0xff]
        %v344 = vadd.f32 %v320, %v334
        %345 = vadd.xlane.f32.xlu0 %v344
        %v346 = vpop.xlane.xlu0 %345
        %v347 = vadd.f32 %v322, %v336
        %348 = vadd.xlane.f32.xlu0 %v347
        %v349 = vpop.xlane.xlu0 %348
        %v350 = vadd.f32 %v342, %v346
        %v351 = vadd.f32 %v343, %v349
        %vm352 = vcmask 7168
        %353 = vst.msk [vmem:[%s246] sm:$0xff] %vm352, %v350
        %354 = vst.msk [vmem:[%s246 + $0x8] sm:$0xff] %vm352, %v351
        %v355 = vld [vmem:[%s251] sm:$0xff]
        %v356 = vld [vmem:[%s251 + $0x8] sm:$0xff]
        %v357 = vmul.f32 %v320, %v320
        %v358 = vmul.f32 %v334, %v334
        %v359 = vmul.f32 %v322, %v322
        %v360 = vmul.f32 %v336, %v336
        %v361 = vadd.f32 %v357, %v358
        %362 = vadd.xlane.f32.xlu0 %v361
        %v363 = vpop.xlane.xlu0 %362
        %v364 = vadd.f32 %v359, %v360
        %365 = vadd.xlane.f32.xlu0 %v364
        %v366 = vpop.xlane.xlu0 %365
        %v367 = vadd.f32 %v355, %v363
        %v368 = vadd.f32 %v356, %v366
        %369 = vst.msk [vmem:[%s251] sm:$0xff] %vm352, %v367
        %370 = vst.msk [vmem:[%s251 + $0x8] sm:$0xff] %vm352, %v368
        %s371 = sand.u32 %s90, 1
        %s372 = scalar_lea.sflag [#allocation3], %s371
        %s373 = sand.u32 %s90, 1
        %s374 = smul.addr %s373, 16
        %s375 = scalar_lea.vmem [#allocation2], %s374
        %p376 = scmp.lt.s32.totalorder %s23, 1
        %s377 = scalar_select %p376, %s23, 1
        %s378 = smul.addr %s377, 2
        %s379 = smul.addr %s378, 8
        %s380 = scalar_lea.vmem %s3, %s379
        %p381 = scmp.lt.s32.totalorder %s23, 1
        %s382 = scalar_select %p381, %s23, 1
        %s383 = smul.addr %s382, 2
        %s384 = smul.addr %s383, 8
        %s385 = scalar_lea.vmem %s4, %s384
        // Predicated region
        $region33: #{tpu_custom_call.1} parent=27 // pred_check
          %p386 = pneg %p100
        $region34: #{tpu_custom_call.1} parent=27 // pred_check_branch
          %388 = sbr.rel (%p386) target = $region36
        $region35: #{tpu_custom_call.1} parent=27 // pred_region
          %s389 = smul.u32 2, %s24
          %391 = vsyncadd %s372, 0
          %s392 = smul.addr %s23, 4
          %s393 = sadd.s32 %s389, %s392
          %s394 = smul.addr %s393, 4
          %s395 = scalar_lea.hbm %s2, %s394
          %s396 = sshll.u32 %s375, 4
          %s397 = int_to_ptr.vmem [resolvable:$true] %s396
          %s398 = sshll.u32 %s395, 4
          %s399 = int_to_ptr.hbm [resolvable:$true] %s398
          %404 = dma.vmem_to_hbm [thread:$0]  %s397, 256, %s399, %s372, 128, 128, 8
        $region36: #{tpu_custom_call.1} parent=27 // pred_fallthru
          _
        // Predicated region
        $region37: #{tpu_custom_call.1} parent=27 // pred_check
          %p405 = pneg %p126
        $region38: #{tpu_custom_call.1} parent=27 // pred_check_branch
          %407 = sbr.rel (%p405) target = $region40
        $region39: #{tpu_custom_call.1} parent=27 // pred_region
          _
        $region40: #{tpu_custom_call.1} parent=27 // pred_fallthru
          _
        // Predicated region
        $region41: #{tpu_custom_call.1} parent=27 // pred_check
          %p408 = pneg %p152
        $region42: #{tpu_custom_call.1} parent=27 // pred_check_branch
          %410 = sbr.rel (%p408) target = $region44
        $region43: #{tpu_custom_call.1} parent=27 // pred_region
          _
        $region44: #{tpu_custom_call.1} parent=27 // pred_fallthru
          _
      $region28: #{tpu_custom_call.1} parent=5 // pred_fallthru
        _
      %p411 = scmp.le.s32.totalorder 2, %s14
      // Predicated region
      $region45: #{tpu_custom_call.1} parent=5 // pred_check
        %p412 = pneg %p411
      $region46: #{tpu_custom_call.1} parent=5 // pred_check_branch
        %414 = sbr.rel (%p412) target = $region48
      $region47: #{tpu_custom_call.1} parent=5 // pred_region
        %s415 = ssub.s32 %s14, 2
        // Predicated region
        $region49: #{tpu_custom_call.1} parent=47 // pred_check
          %p416 = pneg %p106
        $region50: #{tpu_custom_call.1} parent=47 // pred_check_branch
          %418 = sbr.rel (%p416) target = $region52
        $region51: #{tpu_custom_call.1} parent=47 // pred_region
          %s419 = sand.u32 %s91, 1
          %s420 = scalar_lea.sflag [#allocation3], %s419
          %s421 = sand.u32 %s91, 1
          %s422 = smul.addr %s421, 16
          %s423 = scalar_lea.vmem [#allocation2], %s422
          %425 = dma.done %s420, 256
        $region52: #{tpu_custom_call.1} parent=47 // pred_fallthru
          _
        // Predicated region
        $region53: #{tpu_custom_call.1} parent=47 // pred_check
          %p426 = pneg %p132
        $region54: #{tpu_custom_call.1} parent=47 // pred_check_branch
          %428 = sbr.rel (%p426) target = $region56
        $region55: #{tpu_custom_call.1} parent=47 // pred_region
          %p429 = scmp.lt.s32.totalorder %s25, 1
          %s430 = scalar_select %p429, %s25, 1
          %s431 = smul.addr %s430, 2
          %s432 = smul.addr %s431, 8
          %s433 = scalar_lea.vmem %s3, %s432
        $region56: #{tpu_custom_call.1} parent=47 // pred_fallthru
          _
        // Predicated region
        $region57: #{tpu_custom_call.1} parent=47 // pred_check
          %p434 = pneg %p158
        $region58: #{tpu_custom_call.1} parent=47 // pred_check_branch
          %436 = sbr.rel (%p434) target = $region60
        $region59: #{tpu_custom_call.1} parent=47 // pred_region
          %p437 = scmp.lt.s32.totalorder %s25, 1
          %s438 = scalar_select %p437, %s25, 1
          %s439 = smul.addr %s438, 2
          %s440 = smul.addr %s439, 8
          %s441 = scalar_lea.vmem %s4, %s440
        $region60: #{tpu_custom_call.1} parent=47 // pred_fallthru
          _
      $region48: #{tpu_custom_call.1} parent=5 // pred_fallthru
        _
    $region6: #{tpu_custom_call.1} parent=1 // loop_footer
      %s18 = sadd.s32 1, %s14
    $region7: #{tpu_custom_call.1} parent=1 // loop_footer_branch
      %13 = sbr.rel target = $region3
    $region8: #{tpu_custom_call.1} parent=1 // loop_exit
      _
    %442 = vsyncpa [#allocation3], 1
    %s443 = scalar_lea.sflag [#allocation3], 1
    %444 = vsyncpa %s443, 1

</llo_original>
